<compile_context>
chip_gen: v6e
topology: v6e:2x2x1
jax: 0.10.0
libtpu: 0.0.40
codegen_flags: <defaults>
</compile_context>

<pallas_src>
from typing import NamedTuple

import jax
import jax.numpy as jnp
from jax.experimental import pallas as pl
from jax.experimental.pallas import tpu as pltpu

STATE_DIM = 16
H1 = 128                  # hidden_sizes[0]
H2 = 64                   # hidden_sizes[1] (zero-padded to 128 lanes in the slab)
OUT_DIM = 1
BN_EPS = 1e-5

LANES = 128
ROW_W1 = 0                        # slab rows [  0,  16): BN-folded w1   (16, 128)
ROW_W2 = ROW_W1 + STATE_DIM       # slab rows [ 16, 144): w2 zero-padded (128, 128)
ROW_MISC = ROW_W2 + H1            # slab rows [144, 160): w3 row, b1, b2, b3, zeros
SLAB_ROWS = 160                   # multiple of 16 (bf16 sublane packing)

# Batch-grid policy: grid only for large batches; small batches stay gridless.
GRID_BATCH_THRESHOLD = 1024
BATCH_BLOCK = 256


def bias_predictor_kernel(x_ref, slab_ref, out_ref):
    """x:(Bblk,16) f32, slab:(160,128) bf16 -> out:(Bblk,1) f32."""
    x = x_ref[...].astype(jnp.bfloat16)

    w1 = slab_ref[ROW_W1:ROW_W1 + STATE_DIM, :]                 # (16, 128) bf16
    w2 = slab_ref[ROW_W2:ROW_W2 + H1, :]                        # (128, 128) bf16 (cols >=64 are 0)
    misc = slab_ref[ROW_MISC:SLAB_ROWS, :].astype(jnp.float32)  # (16, 128) single aligned load
    w3_row = misc[0:1, :]                                       # (1, 128), lanes >=64 are 0
    b1 = misc[1:2, :]                                           # (1, 128)
    b2 = misc[2:3, :]                                           # (1, 128), lanes >=64 are 0
    b3 = misc[3:4, 0:1]                                         # (1, 1)

    # Layer 1 (BatchNorm pre-folded into w1/b1) + ReLU   [MXU, f32 accumulate]
    h = jnp.dot(x, w1, preferred_element_type=jnp.float32) + b1
    h = jnp.maximum(h, 0.0)

    # Layer 2 (lane-padded 64 -> 128) + ReLU              [MXU, f32 accumulate]
    h = jnp.dot(h.astype(jnp.bfloat16), w2, preferred_element_type=jnp.float32) + b2
    h = jnp.maximum(h, 0.0)

    # Layer 3 (64 -> 1): VPU multiply + lane reduction (no N=1 MXU pass),
    # then Tanh on the EUP.
    y = jnp.sum(h * w3_row, axis=-1, keepdims=True) + b3
    out_ref[...] = jnp.tanh(y)


class PackedParams(NamedTuple):
    slab_bn: jax.Array     # used when batch > 1 (BatchNorm folded into layer 1)
    slab_nobn: jax.Array   # used when batch == 1 (BatchNorm skipped)


def _pack_slab(w1, b1, w2, b2, w3, b3):
    slab = jnp.zeros((SLAB_ROWS, LANES), jnp.float32)
    slab = slab.at[ROW_W1:ROW_W1 + STATE_DIM, :].set(w1)     # (16, 128)
    slab = slab.at[ROW_W2:ROW_W2 + H1, :H2].set(w2)          # (128, 64) -> lane-padded
    slab = slab.at[ROW_MISC + 0, :H2].set(w3[:, 0])          # w3 as a row
    slab = slab.at[ROW_MISC + 1, :].set(b1)
    slab = slab.at[ROW_MISC + 2, :H2].set(b2)
    slab = slab.at[ROW_MISC + 3, :].set(b3[0])               # broadcast scalar bias
    return slab.astype(jnp.bfloat16)


def prepare_params(params):
    """One-time parameter prep: fold eval-mode BatchNorm into layer 1 and pack
    everything into a single lane-dense bf16 slab. Re-run only when the
    underlying parameters change — NOT on the per-call path."""
    (bn_g, bn_b, bn_m, bn_v, w1, b1, w2, b2, w3, b3) = params
    scale = bn_g * jax.lax.rsqrt(bn_v + BN_EPS)              # (state_dim,)
    shift = bn_b - bn_m * scale                              # (state_dim,)
    w1_bn = scale[:, None] * w1                              # (state_dim, H1)
    b1_bn = b1 + shift @ w1                                  # (H1,)
    return PackedParams(
        slab_bn=_pack_slab(w1_bn, b1_bn, w2, b2, w3, b3),
        slab_nobn=_pack_slab(w1, b1, w2, b2, w3, b3),
    )


@jax.jit
def _forward_impl(x, slab):
    batch = x.shape[0]
    flops = 2 * batch * (STATE_DIM * H1 + H1 * H2 + H2 * OUT_DIM)
    bytes_accessed = 4 * x.size + 2 * slab.size + 4 * batch * OUT_DIM
    cost = pl.CostEstimate(flops=flops, transcendentals=batch,
                           bytes_accessed=bytes_accessed)

    if batch < GRID_BATCH_THRESHOLD:
        # Small batch: gridless, all-VMEM (a grid would be pure per-step overhead).
        vmem = pl.BlockSpec(memory_space=pltpu.MemorySpace.VMEM)
        return pl.pallas_call(
            bias_predictor_kernel,
            out_shape=jax.ShapeDtypeStruct((batch, OUT_DIM), jnp.float32),
            in_specs=[vmem, vmem],
            out_specs=vmem,
            cost_estimate=cost,
        )(x, slab)

    # Large batch: batch grid so (a) v7x's two TensorCores split the work via
    # the "parallel" axis and (b) VMEM stays bounded (64 MiB physical on v7x).
    padded = pl.cdiv(batch, BATCH_BLOCK) * BATCH_BLOCK
    x_p = jnp.pad(x, ((0, padded - batch), (0, 0))) if padded != batch else x
    out = pl.pallas_call(
        bias_predictor_kernel,
        out_shape=jax.ShapeDtypeStruct((padded, OUT_DIM), jnp.float32),
        grid=(padded // BATCH_BLOCK,),
        in_specs=[pl.BlockSpec((BATCH_BLOCK, STATE_DIM), lambda i: (i, 0)),
                  pl.BlockSpec((SLAB_ROWS, LANES), lambda i: (0, 0))],
        out_specs=pl.BlockSpec((BATCH_BLOCK, OUT_DIM), lambda i: (i, 0)),
        compiler_params=pltpu.CompilerParams(dimension_semantics=("parallel",)),
        cost_estimate=cost,
    )(x_p, slab)
    # NOTE: at very large batch the (B, 1) output forces masked lane-sparse
    # stores; returning (B,) / fusing the consumer would be the lane-dense fix
    # if that ever shows up in profiles.
    return out[:batch]


def bias_predictor_forward(x, packed: PackedParams):
    """Forward pass. `packed` comes from prepare_params(). The BatchNorm branch
    mirrors PyTorch's `if x.size(0) > 1` (static-shape check; retraces per
    distinct batch size)."""
    slab = packed.slab_bn if x.shape[0] > 1 else packed.slab_nobn
    return _forward_impl(x, slab)


def _linear_params(key, fan_in, fan_out):
    """PyTorch Linear default init (uniform +/- 1/sqrt(fan_in)).
    Weight returned transposed: (fan_in, fan_out); bias as (fan_out,)."""
    kw, kb = jax.random.split(key)
    bound = 1.0 / (fan_in ** 0.5)
    w = jax.random.uniform(kw, (fan_in, fan_out), jnp.float32, -bound, bound)
    b = jax.random.uniform(kb, (fan_out,), jnp.float32, -bound, bound)
    return w, b


def make_params(key):
    k1, k2, k3 = jax.random.split(key, 3)
    kg, kb_, km, kv = jax.random.split(jax.random.fold_in(key, 7), 4)
    bn_gamma = 1.0 + 0.1 * jax.random.normal(kg, (STATE_DIM,), jnp.float32)
    bn_beta = 0.1 * jax.random.normal(kb_, (STATE_DIM,), jnp.float32)
    bn_mean = 0.1 * jax.random.normal(km, (STATE_DIM,), jnp.float32)
    bn_var = 1.0 + 0.1 * jax.random.uniform(kv, (STATE_DIM,), jnp.float32)

    w1, b1 = _linear_params(k1, STATE_DIM, H1)   # 16 -> 128
    w2, b2 = _linear_params(k2, H1, H2)          # 128 -> 64
    w3, b3 = _linear_params(k3, H2, OUT_DIM)     # 64 -> 1
    return (bn_gamma, bn_beta, bn_mean, bn_var, w1, b1, w2, b2, w3, b3)


def reference_forward(x, params):
    """Pure-JAX f32 reference mirroring the PyTorch forward (eval mode)."""
    (bn_g, bn_b, bn_m, bn_v, w1, b1, w2, b2, w3, b3) = params
    h = x
    if x.shape[0] > 1:
        h = (h - bn_m) / jnp.sqrt(bn_v + BN_EPS) * bn_g + bn_b
    h = jax.nn.relu(h @ w1 + b1)
    h = jax.nn.relu(h @ w2 + b2)
    return jnp.tanh(h @ w3 + b3)


if __name__ == "__main__":
    key = jax.random.PRNGKey(0)
    k_x, k_p = jax.random.split(key)
    params = make_params(k_p)
    packed = prepare_params(params)   # one-time prep, off the per-call path

    # batch > 1 (small): BatchNorm active (folded into layer 1), gridless path.
    x = jax.random.normal(k_x, (4, STATE_DIM), jnp.float32)
    out = jax.block_until_ready(bias_predictor_forward(x, packed))
    ref = reference_forward(x, params)
    assert out.shape == (4, OUT_DIM)
    assert jnp.allclose(out, ref, atol=3e-2, rtol=3e-2), float(jnp.max(jnp.abs(out - ref)))

    # batch == 1: BatchNorm skipped (matches `if x.size(0) > 1`), gridless path.
    x1 = jax.random.normal(jax.random.fold_in(k_x, 1), (1, STATE_DIM), jnp.float32)
    out1 = jax.block_until_ready(bias_predictor_forward(x1, packed))
    ref1 = reference_forward(x1, params)
    assert out1.shape == (1, OUT_DIM)
    assert jnp.allclose(out1, ref1, atol=3e-2, rtol=3e-2), float(jnp.max(jnp.abs(out1 - ref1)))

    # Larger batch: exercises the parallel batch grid + padding path.
    xg = jax.random.normal(jax.random.fold_in(k_x, 2), (1100, STATE_DIM), jnp.float32)
    outg = jax.block_until_ready(bias_predictor_forward(xg, packed))
    refg = reference_forward(xg, params)
    assert outg.shape == (1100, OUT_DIM)
    assert jnp.allclose(outg, refg, atol=3e-2, rtol=3e-2), float(jnp.max(jnp.abs(outg - refg)))

    print("KERNEL_OK")
</pallas_src>

<mosaic_0001>
module attributes {stable_mosaic.version = 11 : i64} {
  func.func @bias_predictor_kernel(%arg0: memref<4x16xf32, #tpu.memory_space<vmem>>, %arg1: memref<160x128xbf16, #tpu.memory_space<vmem>>, %arg2: memref<4x1xf32, #tpu.memory_space<vmem>>) attributes {dimension_semantics = [], scalar_prefetch = 0 : i64, scratch_operands = 0 : i64, tpu.core_type = #tpu.core_type<tc>} {
    %c0 = arith.constant 0 : index
    %c0_0 = arith.constant 0 : index
    %0 = vector.load %arg0[%c0, %c0_0] : memref<4x16xf32, #tpu.memory_space<vmem>>, vector<4x16xf32>
    %1 = arith.truncf %0 : vector<4x16xf32> to vector<4x16xbf16>
    %c0_1 = arith.constant 0 : index
    %c0_2 = arith.constant 0 : index
    %2 = vector.load %arg1[%c0_1, %c0_2] : memref<160x128xbf16, #tpu.memory_space<vmem>>, vector<16x128xbf16>
    %c16 = arith.constant 16 : index
    %c0_3 = arith.constant 0 : index
    %3 = vector.load %arg1[%c16, %c0_3] : memref<160x128xbf16, #tpu.memory_space<vmem>>, vector<128x128xbf16>
    %c144 = arith.constant 144 : index
    %c0_4 = arith.constant 0 : index
    %4 = vector.load %arg1[%c144, %c0_4] : memref<160x128xbf16, #tpu.memory_space<vmem>>, vector<16x128xbf16>
    %5 = arith.extf %4 : vector<16x128xbf16> to vector<16x128xf32>
    %6 = vector.extract_strided_slice %5 {offsets = [0, 0], sizes = [1, 128], strides = [1, 1]} : vector<16x128xf32> to vector<1x128xf32>
    %7 = vector.extract_strided_slice %5 {offsets = [1, 0], sizes = [1, 128], strides = [1, 1]} : vector<16x128xf32> to vector<1x128xf32>
    %8 = vector.extract_strided_slice %5 {offsets = [2, 0], sizes = [1, 128], strides = [1, 1]} : vector<16x128xf32> to vector<1x128xf32>
    %9 = vector.extract_strided_slice %5 {offsets = [3, 0], sizes = [1, 1], strides = [1, 1]} : vector<16x128xf32> to vector<1x1xf32>
    %cst = arith.constant dense<0.000000e+00> : vector<4x128xf32>
    %10 = tpu.matmul %1, %2, %cst {dimension_numbers = #tpu.dot_dimension_numbers<[1], [0], [0], [1], [0, 0, 1, 1], [], []>} : vector<4x16xbf16>, vector<16x128xbf16>, vector<4x128xf32> -> vector<4x128xf32>
    %11 = vector.broadcast %7 : vector<1x128xf32> to vector<4x128xf32>
    %12 = arith.addf %10, %11 : vector<4x128xf32>
    %cst_5 = arith.constant 0.000000e+00 : f32
    %13 = vector.broadcast %cst_5 : f32 to vector<4x128xf32>
    %14 = arith.maximumf %12, %13 : vector<4x128xf32>
    %15 = arith.truncf %14 : vector<4x128xf32> to vector<4x128xbf16>
    %cst_6 = arith.constant dense<0.000000e+00> : vector<4x128xf32>
    %16 = tpu.matmul %15, %3, %cst_6 {dimension_numbers = #tpu.dot_dimension_numbers<[1], [0], [0], [1], [0, 0, 1, 1], [], []>} : vector<4x128xbf16>, vector<128x128xbf16>, vector<4x128xf32> -> vector<4x128xf32>
    %17 = vector.broadcast %8 : vector<1x128xf32> to vector<4x128xf32>
    %18 = arith.addf %16, %17 : vector<4x128xf32>
    %cst_7 = arith.constant 0.000000e+00 : f32
    %19 = vector.broadcast %cst_7 : f32 to vector<4x128xf32>
    %20 = arith.maximumf %18, %19 : vector<4x128xf32>
    %21 = vector.broadcast %6 : vector<1x128xf32> to vector<4x128xf32>
    %22 = arith.mulf %20, %21 : vector<4x128xf32>
    %cst_8 = arith.constant dense<0.000000e+00> : vector<4xf32>
    %23 = vector.multi_reduction <add>, %22, %cst_8 [1] : vector<4x128xf32> to vector<4xf32>
    %24 = vector.shape_cast %23 : vector<4xf32> to vector<4x1xf32>
    %25 = vector.broadcast %9 : vector<1x1xf32> to vector<4x1xf32>
    %26 = arith.addf %24, %25 : vector<4x1xf32>
    %27 = math.tanh %26 : vector<4x1xf32>
    %c0_9 = arith.constant 0 : index
    %c0_10 = arith.constant 0 : index
    %28 = vector.load %arg2[%c0_9, %c0_10] : memref<4x1xf32, #tpu.memory_space<vmem>>, vector<4x1xf32>
    tpu.vector_store %arg2[%c0_9, %c0_10], %27 {strides = array<i32>} : memref<4x1xf32, #tpu.memory_space<vmem>>, vector<4x1xf32>,
    return
  }
}

</mosaic_0001>

<llo_original>
// kernel: _forward_impl.1
$region0: #{_forward_impl.1}
  #allocation0 [shape = 'u32[]', space=smem, size = 0x4, offset = 0x4, fixed_abs, tag = 'smem constant byte address 0x4 - core index']
  #allocation1 [shape = 'u32[144,128]{1,0:T(1,128)}', space=vmem, size = 0x12000, scoped, tag = 'internal scratch']
  %s0 = inlined_call_operand.hbm [shape: f32[4,16], index: 0, kind: input, shape index: {}]
  %s1 = inlined_call_operand.hbm [shape: bf16[160,128], index: 1, kind: input, shape index: {}]
  %s2 = inlined_call_operand.vmem [shape: f32[4,1], index: 2, kind: output, shape index: {}]
  %s3 = sld [smem:[#allocation0]]
  $region26: #{_forward_impl.1} parent=0
    _
  %s5 = ssub.s32 1, %s3
  %s6 = scalar_select 0, %s5, %s3
  $region1: #{_forward_impl.1} parent=0
    #allocation2 [shape = 'u8[2048]{0}', space=vmem, size = 0x800, scoped, tag = 'input window, operand 0, single buffered']
    #allocation3 [shape = 's32[1]{0}', space=sflag, size = 0x4, scoped, tag = 'scoped memory for _forward_impl.1']
    #allocation4 [shape = 'u8[40960]{0}', space=vmem, size = 0xa000, scoped, tag = 'input window, operand 1, single buffered']
    #allocation5 [shape = 's32[1]{0}', space=sflag, size = 0x4, scoped, tag = 'scoped memory for _forward_impl.1']
    %7 = vsyncpa [#allocation3], 0
    %8 = vsyncpa [#allocation5], 0
    // Predicated region
    $region2: #{_forward_impl.1} parent=1 // pred_check
      _
    $region3: #{_forward_impl.1} parent=1 // pred_check_branch
      %10 = sbr.rel (0) target = $region5
    $region4: #{_forward_impl.1} parent=1 // pred_region
      %s12 = ssub.s32 64, 64
      %13 = vsyncadd [#allocation3], %s12
      %s15 = sshll.u32 [#allocation2], 4
      %s16 = int_to_ptr.vmem [resolvable:$true] %s15
      %18 = dma.hbm_to_vmem [thread:$0]  %s0, 64, %s16, [#allocation3]
    $region5: #{_forward_impl.1} parent=1 // pred_fallthru
      _
    // Predicated region
    $region6: #{_forward_impl.1} parent=1 // pred_check
      _
    $region7: #{_forward_impl.1} parent=1 // pred_check_branch
      %20 = sbr.rel (0) target = $region9
    $region8: #{_forward_impl.1} parent=1 // pred_region
      %s22 = ssub.s32 1280, 1280
      %23 = vsyncadd [#allocation5], %s22
      %s24 = sshll.u32 [#allocation4], 4
      %s25 = int_to_ptr.vmem [resolvable:$true] %s24
      %30 = dma.hbm_to_vmem [thread:$0]  %s1, 1280, %s25, [#allocation5], 64, 64, 4
    $region9: #{_forward_impl.1} parent=1 // pred_fallthru
      _
    // Predicated region
    $region10: #{_forward_impl.1} parent=1 // pred_check
      _
    $region11: #{_forward_impl.1} parent=1 // pred_check_branch
      %32 = sbr.rel (0) target = $region13
    $region12: #{_forward_impl.1} parent=1 // pred_region
      %33 = dma.done [#allocation3], 64
    $region13: #{_forward_impl.1} parent=1 // pred_fallthru
      _
    // Predicated region
    $region14: #{_forward_impl.1} parent=1 // pred_check
      _
    $region15: #{_forward_impl.1} parent=1 // pred_check_branch
      %35 = sbr.rel (0) target = $region17
    $region16: #{_forward_impl.1} parent=1 // pred_region
      %36 = dma.done [#allocation5], 1280
    $region17: #{_forward_impl.1} parent=1 // pred_fallthru
      _
    %v38 = vld [vmem:[#allocation2] sm:$0xf]
    %v39 = vpack.c.bf16 %v38, %v38
    %v40 = vld [vmem:[#allocation4] sm:$0xf]
    %v41 = vld [vmem:[#allocation4 + $0x4] sm:$0xf]
    %v42 = vld [vmem:[#allocation4 + $0x8] sm:$0xf]
    %v43 = vld [vmem:[#allocation4 + $0xc] sm:$0xf]
    %v44 = vld [vmem:[#allocation4 + $0x10] sm:$0xf]
    %v45 = vld [vmem:[#allocation4 + $0x14] sm:$0xf]
    %v46 = vld [vmem:[#allocation4 + $0x18] sm:$0xf]
    %v47 = vld [vmem:[#allocation4 + $0x1c] sm:$0xf]
    %v48 = vld [vmem:[#allocation4 + $0x20] sm:$0xf]
    %v49 = vld [vmem:[#allocation4 + $0x24] sm:$0xf]
    %v50 = vld [vmem:[#allocation4 + $0x28] sm:$0xf]
    %v51 = vld [vmem:[#allocation4 + $0x2c] sm:$0xf]
    %v52 = vld [vmem:[#allocation4 + $0x30] sm:$0xf]
    %v53 = vld [vmem:[#allocation4 + $0x34] sm:$0xf]
    %v54 = vld [vmem:[#allocation4 + $0x38] sm:$0xf]
    %v55 = vld [vmem:[#allocation4 + $0x3c] sm:$0xf]
    %v56 = vld [vmem:[#allocation4 + $0x40] sm:$0xf]
    %v57 = vld [vmem:[#allocation4 + $0x44] sm:$0xf]
    %v58 = vld [vmem:[#allocation4 + $0x48] sm:$0xf]
    %v59 = vunpack.c.l.bf16 %v58
    %v60 = vlaneseq
    %v61 = vshrl.u32 %v60, 7
    %v62 = vsub.s32 1, %v61
    %v63 = vrot.slane %v59, %v62
    %v66 = vunpack.c.l.b16 %v40
    %v67 = vunpack.c.l.b16 %v41
    %v68 = vpack.c.b16 %v67, %v66
    %vm70 = vcmask 130048
    %v72 = vsel %vm70, %v39, 0
    %74 = vmatprep.subr.bf16.mxu0 0
    %75 = vmatpush1.bf16.msra.mxu0 0
    %76 = vmatprep.subr.bf16.mxu0 0
    %77 = vmatpush1.bf16.msra.mxu0 0
    %78 = vmatprep.subr.bf16.mxu0 0
    %79 = vmatpush1.bf16.msra.mxu0 0
    %80 = vmatprep.subr.bf16.mxu0 0
    %81 = vmatpush1.bf16.msra.mxu0 0
    %82 = vmatprep.subr.bf16.mxu0 0
    %83 = vmatpush1.bf16.msra.mxu0 0
    %84 = vmatprep.subr.bf16.mxu0 0
    %85 = vmatpush1.bf16.msra.mxu0 0
    %86 = vmatprep.subr.bf16.mxu0 0
    %87 = vmatpush1.bf16.msra.mxu0 0
    %88 = vmatprep.subr.bf16.mxu0 0
    %89 = vmatpush1.bf16.msra.mxu0 %v68
    %90 = vmatprep.subr.bf16.mxu0 0
    %91 = vmatpush2.bf16.msra.mxu0 0
    %92 = vmatprep.subr.bf16.mxu0 0
    %93 = vmatpush2.bf16.msra.mxu0 0
    %94 = vmatprep.subr.bf16.mxu0 0
    %95 = vmatpush2.bf16.msra.mxu0 0
    %96 = vmatprep.subr.bf16.mxu0 0
    %97 = vmatpush2.bf16.msra.mxu0 0
    %98 = vmatprep.subr.bf16.mxu0 0
    %99 = vmatpush2.bf16.msra.mxu0 0
    %100 = vmatprep.subr.bf16.mxu0 0
    %101 = vmatpush2.bf16.msra.mxu0 0
    %102 = vmatprep.subr.bf16.mxu0 0
    %103 = vmatpush2.bf16.msra.mxu0 0
    %104 = vmatprep.subr.bf16.mxu0 0
    %105 = vmatpush2.bf16.msra.mxu0 0
    %106 = vmatprep.mubr.bf16.mxu0 0
    %107 = vmatmul.mubr.bf16.gmra.mxu0 %v72
    %v108 = vpop.f32.mrf.mxu0
    %v109 = vadd.f32 %v63, %v108
    %v110 = vpop.f32.mrf.mxu0
    %v111 = vpop.f32.mrf.mxu0
    %v112 = vpop.f32.mrf.mxu0
    %113 = vdwg.mxu0
    %v114 = vmax.f32 %v109, 0.0
    %v115 = vpack.c.bf16 %v114, %v114
    %v116 = vlaneseq
    %v117 = vshrl.u32 %v116, 7
    %v118 = vsub.s32 2, %v117
    %v119 = vrot.slane %v59, %v118
    %v136 = vunpack.c.l.b16 %v42
    %v137 = vunpack.c.l.b16 %v43
    %v138 = vunpack.c.l.b16 %v44
    %v139 = vunpack.c.l.b16 %v45
    %v140 = vunpack.c.l.b16 %v46
    %v141 = vunpack.c.l.b16 %v47
    %v142 = vunpack.c.l.b16 %v48
    %v143 = vunpack.c.l.b16 %v49
    %v144 = vunpack.c.l.b16 %v50
    %v145 = vunpack.c.l.b16 %v51
    %v146 = vunpack.c.l.b16 %v52
    %v147 = vunpack.c.l.b16 %v53
    %v148 = vunpack.c.l.b16 %v54
    %v149 = vunpack.c.l.b16 %v55
    %v150 = vunpack.c.l.b16 %v56
    %v151 = vunpack.c.l.b16 %v57
    %v152 = vpack.c.b16 %v137, %v136
    %v153 = vpack.c.b16 %v139, %v138
    %v154 = vpack.c.b16 %v141, %v140
    %v155 = vpack.c.b16 %v143, %v142
    %v156 = vpack.c.b16 %v145, %v144
    %v157 = vpack.c.b16 %v147, %v146
    %v158 = vpack.c.b16 %v149, %v148
    %v159 = vpack.c.b16 %v151, %v150
    %168 = vmatprep.subr.bf16.mxu0 0
    %169 = vmatpush1.bf16.msra.mxu0 %v159
    %170 = vmatprep.subr.bf16.mxu0 0
    %171 = vmatpush1.bf16.msra.mxu0 %v158
    %172 = vmatprep.subr.bf16.mxu0 0
    %173 = vmatpush1.bf16.msra.mxu0 %v157
    %174 = vmatprep.subr.bf16.mxu0 0
    %175 = vmatpush1.bf16.msra.mxu0 %v156
    %176 = vmatprep.subr.bf16.mxu0 0
    %177 = vmatpush1.bf16.msra.mxu0 %v155
    %178 = vmatprep.subr.bf16.mxu0 0
    %179 = vmatpush1.bf16.msra.mxu0 %v154
    %180 = vmatprep.subr.bf16.mxu0 0
    %181 = vmatpush1.bf16.msra.mxu0 %v153
    %182 = vmatprep.subr.bf16.mxu0 0
    %183 = vmatpush1.bf16.msra.mxu0 %v152
    %184 = vmatprep.subr.bf16.mxu0 0
    %185 = vmatpush2.bf16.msra.mxu0 0
    %186 = vmatprep.subr.bf16.mxu0 0
    %187 = vmatpush2.bf16.msra.mxu0 0
    %188 = vmatprep.subr.bf16.mxu0 0
    %189 = vmatpush2.bf16.msra.mxu0 0
    %190 = vmatprep.subr.bf16.mxu0 0
    %191 = vmatpush2.bf16.msra.mxu0 0
    %192 = vmatprep.subr.bf16.mxu0 0
    %193 = vmatpush2.bf16.msra.mxu0 0
    %194 = vmatprep.subr.bf16.mxu0 0
    %195 = vmatpush2.bf16.msra.mxu0 0
    %196 = vmatprep.subr.bf16.mxu0 0
    %197 = vmatpush2.bf16.msra.mxu0 0
    %198 = vmatprep.subr.bf16.mxu0 0
    %199 = vmatpush2.bf16.msra.mxu0 0
    %200 = vmatprep.mubr.bf16.mxu0 0
    %201 = vmatmul.mubr.bf16.gmra.mxu0 %v115
    %v202 = vpop.f32.mrf.mxu0
    %v203 = vadd.f32 %v119, %v202
    %v204 = vpop.f32.mrf.mxu0
    %v205 = vpop.f32.mrf.mxu0
    %v206 = vpop.f32.mrf.mxu0
    %207 = vdwg.mxu0
    %v208 = vmax.f32 %v203, 0.0
    %v209 = vlaneseq
    %v210 = vshrl.u32 %v209, 7
    %v211 = vsub.s32 0, %v210
    %v212 = vrot.slane %v59, %v211
    %v213 = vmul.f32 %v208, %v212
    %vm214 = vcmask 1043456
    %v215 = vsel %vm214, %v213, 0.0
    %216 = vadd.xlane.f32.xlu0 %v215
    %v217 = vpop.xlane.xlu0 %216
    %v218 = vlaneseq
    %v219 = vshrl.u32 %v218, 7
    %v220 = vsub.s32 3, %v219
    %v221 = vrot.slane %v59, %v220
    %v222 = vadd.f32 %v217, %v221
    %v223 = vtanh.pop %v222
    %vm224 = vcmask 3072
    %225 = vst.msk [vmem:[%s2] sm:$0xf] %vm224, %v223
    // Predicated region
    $region18: #{_forward_impl.1} parent=1 // pred_check
      _
    $region19: #{_forward_impl.1} parent=1 // pred_check_branch
      %227 = sbr.rel (0) target = $region21
    $region20: #{_forward_impl.1} parent=1 // pred_region
      _
    $region21: #{_forward_impl.1} parent=1 // pred_fallthru
      _
    // Predicated region
    $region22: #{_forward_impl.1} parent=1 // pred_check
      _
    $region23: #{_forward_impl.1} parent=1 // pred_check_branch
      %229 = sbr.rel (0) target = $region25
    $region24: #{_forward_impl.1} parent=1 // pred_region
      _
    $region25: #{_forward_impl.1} parent=1 // pred_fallthru
      _
    %230 = vsyncpa [#allocation3], 1
    %231 = vsyncpa [#allocation5], 1

</llo_original>
